<compile_context>
chip_gen: v6e
topology: v6e:2x2x1
jax: 0.10.0
libtpu: 0.0.40
codegen_flags: <defaults>
</compile_context>

<pallas_src>
import math

import jax
import jax.numpy as jnp
from jax.experimental import pallas as pl
from jax.experimental.pallas import tpu as pltpu


def _attention_kernel(q_ref, enc_ref, wkv_ref, bkv_ref, out_ref):
    """One grid step handles a block of Bblk batch rows.

    q_ref   : (Bblk, H)     bf16, already Q-projected and scaled by 1/sqrt(H)
    enc_ref : (Bblk, S, H)  bf16 encoder outputs block
    wkv_ref : (H, 2H)       bf16 fused [K | V] weight, (in, out) layout
    bkv_ref : (1, 2H)       f32 fused [K | V] bias
    out_ref : (Bblk, H)     f32
    """
    bblk, s, h = enc_ref.shape

    # Fused K/V projection: one (Bblk*S, H) @ (H, 2H) MXU matmul, f32 accumulate.
    # Collapsing (Bblk, S) -> Bblk*S is layout-preserving when S % 8 == 0.
    enc2d = enc_ref[...].reshape(bblk * s, h)
    kv = jnp.dot(enc2d, wkv_ref[...], preferred_element_type=jnp.float32)
    kv = (kv + bkv_ref[...]).astype(jnp.bfloat16)          # (Bblk*S, 2H)

    # Leading-dim split back to (Bblk, S, 2H) is layout-preserving; the lane
    # split at column H is tile-aligned (no copy) when H % 128 == 0.
    kv3 = kv.reshape(bblk, s, 2 * h)
    k = kv3[:, :, :h]                                       # (Bblk, S, H)
    v = kv3[:, :, h:]                                       # (Bblk, S, H)

    # score[b, s] = sum_h q[b, h] * k[b, s, h]  (1/sqrt(H) already folded into q).
    q = q_ref[...][:, None, :]                              # (Bblk, 1, H)
    score = jnp.einsum("bqh,bkh->bqk", q, k,
                       preferred_element_type=jnp.float32)  # (Bblk, 1, S)

    # Numerically-stable softmax over the key axis (f32, EUP reciprocal).
    score_max = jnp.max(score, axis=-1, keepdims=True)
    exp_s = jnp.exp(score - score_max)
    denom = jnp.sum(exp_s, axis=-1, keepdims=True)
    attn = (exp_s * pl.reciprocal(denom, approx=True)).astype(v.dtype)

    # out[b, h] = sum_s attn[b, s] * v[b, s, h]
    out = jnp.einsum("bqk,bkh->bqh", attn, v,
                     preferred_element_type=jnp.float32)    # (Bblk, 1, H)
    out_ref[...] = out[:, 0, :].astype(out_ref.dtype)


def _choose_block_b(B, S, H, requested=None):
    """Pick a batch block that feeds the MXU, fits VMEM, and divides B."""
    if requested is None:
        # Target >= ~256 rows (Bblk*S) for the K/V projection matmul.
        desired = max(8, -(-256 // max(S, 1)))
        desired = ((desired + 7) // 8) * 8
        # VMEM budget per step: bf16 enc double-buffer + f32/bf16 kv temporaries.
        # Kept well under v7x's 64 MiB (v5e/v6e have 128 MiB, so this is safe
        # everywhere).
        per_row_bytes = S * H * (2 * 2 + 6 * 4)
        desired = min(desired, max(8, (24 << 20) // max(per_row_bytes, 1)))
    else:
        desired = requested
    if B >= 16:
        # Keep >= 2 grid steps so the batch axis can shard across v7x's 2 TCs.
        desired = min(desired, B // 2)
    desired = max(1, min(desired, B))
    # Largest block <= desired that divides B and keeps sublane-dense tiles
    # (multiple of 8, or the whole batch) -> no wrapper-side padding copy of
    # encoder_outputs is ever needed.
    for bblk in range(desired, 0, -1):
        if B % bblk == 0 and (bblk % 8 == 0 or bblk == B):
            return bblk
    for bblk in range(desired, 0, -1):
        if B % bblk == 0:
            return bblk
    return 1


def attention_network(Q, encoder_outputs, params, *, block_b=None):
    """Pallas implementation of AttentionNetWork.forward.

    Q:               (B, H) float32
    encoder_outputs: (B, S, H) float32
    params: dict with wq, bq, wk, bk, wv, bv in PyTorch nn.Linear layout
            ((out, in) weights, (out,) biases).
    Returns: (B, H) float32

    Best layouts when S % 8 == 0 and H % 128 == 0 (typical production dims);
    other shapes are still correct, Mosaic just inserts small relayout copies.
    """
    B, H = Q.shape
    _, S, _ = encoder_outputs.shape
    scale = 1.0 / math.sqrt(H)

    # ---- One-time massaging on the XLA side --------------------------------
    # Hoist the (B,H)@(H,H) Q projection out of the kernel (it would badly
    # underfeed the MXU at per-block M=Bblk and waste weight VMEM inside the
    # kernel); fold the 1/sqrt(H) attention scale into it; cast to bf16.
    q_proj = (Q.astype(jnp.float32) @ params["wq"].T.astype(jnp.float32)
              + params["bq"].astype(jnp.float32)) * scale
    q_proj = q_proj.astype(jnp.bfloat16)

    # Fused [K | V] weight, pre-transposed to (in, out), bf16 for the MXU.
    wkv_t = jnp.concatenate([params["wk"].T, params["wv"].T],
                            axis=1).astype(jnp.bfloat16)            # (H, 2H)
    bkv = jnp.concatenate([params["bk"], params["bv"]]
                          ).reshape(1, 2 * H).astype(jnp.float32)    # (1, 2H)

    enc_bf16 = encoder_outputs.astype(jnp.bfloat16)

    bblk = _choose_block_b(B, S, H, block_b)
    grid = (B // bblk,)

    # Explicit VMEM budget (defaults are 16/32 MiB scoped and would otherwise
    # shrink pipelining at production H); capped below v7x's 64 MiB physical.
    step_rows = bblk * S
    vmem_est = (
        2 * bblk * H * 2                       # q blocks (bf16, double-buffered)
        + 2 * bblk * S * H * 2                 # enc blocks (bf16, double-buffered)
        + 2 * bblk * H * 4                     # out blocks (f32, double-buffered)
        + H * 2 * H * 2 + 2 * H * 4            # single-buffered wkv (bf16) + bkv (f32)
        + step_rows * 2 * H * (4 + 2)          # kv f32 accumulator + bf16 copy
        + step_rows * 2 * H * 2                # worst-case k/v slice copies
    )
    vmem_limit = int(min(48 * 1024 * 1024, max(16 * 1024 * 1024, 2 * vmem_est)))

    grid_spec = pltpu.PrefetchScalarGridSpec(
        num_scalar_prefetch=0,
        grid=grid,
        in_specs=[
            pl.BlockSpec((bblk, H), lambda b: (b, 0)),         # q (projected)
            pl.BlockSpec((bblk, S, H), lambda b: (b, 0, 0)),   # encoder_outputs
            pl.BlockSpec((H, 2 * H), lambda b: (0, 0),         # fused wkv (constant:
                         pipeline_mode=pl.Buffered(buffer_count=1)),  # single-buffer)
            pl.BlockSpec((1, 2 * H), lambda b: (0, 0),
                         pipeline_mode=pl.Buffered(buffer_count=1)),  # fused bkv
        ],
        out_specs=pl.BlockSpec((bblk, H), lambda b: (b, 0)),
    )

    out = pl.pallas_call(
        _attention_kernel,
        out_shape=jax.ShapeDtypeStruct((B, H), jnp.float32),
        grid_spec=grid_spec,
        compiler_params=pltpu.CompilerParams(
            dimension_semantics=("parallel",),   # batch blocks shard across TCs (v7x)
            vmem_limit_bytes=vmem_limit,
        ),
    )(q_proj, enc_bf16, wkv_t, bkv)

    return out


def init_params(key, h_dim):
    """Deterministic parameter init matching nn.Linear shapes."""
    ks = jax.random.split(key, 6)
    bound = 1.0 / math.sqrt(h_dim)
    u = lambda k, shape: jax.random.uniform(
        k, shape, dtype=jnp.float32, minval=-bound, maxval=bound)
    return {
        "wq": u(ks[0], (h_dim, h_dim)), "bq": u(ks[1], (h_dim,)),
        "wk": u(ks[2], (h_dim, h_dim)), "bk": u(ks[3], (h_dim,)),
        "wv": u(ks[4], (h_dim, h_dim)), "bv": u(ks[5], (h_dim,)),
    }


def reference(Q, enc, p):
    """Pure-JAX f32 reference mirroring the PyTorch forward."""
    h = Q.shape[-1]
    q = Q @ p["wq"].T + p["bq"]                       # (B, H)
    k = enc @ p["wk"].T + p["bk"]                     # (B, S, H)
    v = enc @ p["wv"].T + p["bv"]                     # (B, S, H)
    q = q[:, None, :]                                 # (B, 1, H)
    score = jnp.einsum("bqh,bsh->bqs", q, k) / math.sqrt(h)
    attn = jax.nn.softmax(score, axis=-1)
    out = jnp.einsum("bqs,bsh->bqh", attn, v)
    return out[:, 0, :]


if __name__ == "__main__":
    B, S, H = 2, 8, 32
    key = jax.random.PRNGKey(0)
    k_q, k_enc, k_p = jax.random.split(key, 3)

    Q = jax.random.normal(k_q, (B, H), dtype=jnp.float32)
    encoder_outputs = jax.random.normal(k_enc, (B, S, H), dtype=jnp.float32)
    params = init_params(k_p, H)

    out = attention_network(Q, encoder_outputs, params)
    out = jax.block_until_ready(out)

    ref = reference(Q, encoder_outputs, params)
    assert out.shape == (B, H)
    # bf16 inputs/weights (with f32 accumulation + f32 softmax) and the EUP
    # approximate reciprocal => compare against the f32 reference loosely.
    err = float(jnp.max(jnp.abs(out - ref)))
    assert jnp.allclose(out, ref, atol=3e-2, rtol=3e-2), f"max abs err {err}"

    print("KERNEL_OK")
</pallas_src>

<mosaic_0001>
module attributes {stable_mosaic.version = 11 : i64} {
  func.func @_attention_kernel(%arg0: i32, %arg1: memref<2x32xbf16, #tpu.memory_space<vmem>>, %arg2: memref<2x8x32xbf16, #tpu.memory_space<vmem>>, %arg3: memref<32x64xbf16, #tpu.memory_space<vmem>>, %arg4: memref<1x64xf32, #tpu.memory_space<vmem>>, %arg5: memref<2x32xf32, #tpu.memory_space<vmem>>) attributes {dimension_semantics = [#tpu.dimension_semantics<parallel>], iteration_bounds = array<i64: 1>, scalar_prefetch = 0 : i64, scratch_operands = 0 : i64, tpu.core_type = #tpu.core_type<tc>, window_params = [{transform_indices = @transform_0, window_bounds = array<i64: 2, 32>}, {transform_indices = @transform_1, window_bounds = array<i64: 2, 8, 32>}, {pipeline_mode = #tpu.pipeline_mode<synchronous>, transform_indices = @transform_2, window_bounds = array<i64: 32, 64>}, {pipeline_mode = #tpu.pipeline_mode<synchronous>, transform_indices = @transform_3, window_bounds = array<i64: 1, 64>}, {transform_indices = @transform_4, window_bounds = array<i64: 2, 32>}]} {
    %c0 = arith.constant 0 : index
    %c0_0 = arith.constant 0 : index
    %c0_1 = arith.constant 0 : index
    %0 = vector.load %arg2[%c0, %c0_0, %c0_1] : memref<2x8x32xbf16, #tpu.memory_space<vmem>>, vector<2x8x32xbf16>
    %1 = vector.shape_cast %0 : vector<2x8x32xbf16> to vector<16x32xbf16>
    %c0_2 = arith.constant 0 : index
    %c0_3 = arith.constant 0 : index
    %2 = vector.load %arg3[%c0_2, %c0_3] : memref<32x64xbf16, #tpu.memory_space<vmem>>, vector<32x64xbf16>
    %cst = arith.constant dense<0.000000e+00> : vector<16x64xf32>
    %3 = tpu.matmul %1, %2, %cst {dimension_numbers = #tpu.dot_dimension_numbers<[1], [0], [0], [1], [0, 0, 1, 1], [], []>} : vector<16x32xbf16>, vector<32x64xbf16>, vector<16x64xf32> -> vector<16x64xf32>
    %c0_4 = arith.constant 0 : index
    %c0_5 = arith.constant 0 : index
    %4 = vector.load %arg4[%c0_4, %c0_5] : memref<1x64xf32, #tpu.memory_space<vmem>>, vector<1x64xf32>
    %5 = vector.broadcast %4 : vector<1x64xf32> to vector<16x64xf32>
    %6 = arith.addf %3, %5 : vector<16x64xf32>
    %7 = arith.truncf %6 : vector<16x64xf32> to vector<16x64xbf16>
    %8 = vector.shape_cast %7 : vector<16x64xbf16> to vector<2x8x64xbf16>
    %9 = vector.extract_strided_slice %8 {offsets = [0, 0, 0], sizes = [2, 8, 32], strides = [1, 1, 1]} : vector<2x8x64xbf16> to vector<2x8x32xbf16>
    %10 = vector.extract_strided_slice %8 {offsets = [0, 0, 32], sizes = [2, 8, 32], strides = [1, 1, 1]} : vector<2x8x64xbf16> to vector<2x8x32xbf16>
    %c0_6 = arith.constant 0 : index
    %c0_7 = arith.constant 0 : index
    %11 = vector.load %arg1[%c0_6, %c0_7] : memref<2x32xbf16, #tpu.memory_space<vmem>>, vector<2x32xbf16>
    %12 = vector.shape_cast %11 : vector<2x32xbf16> to vector<2x1x32xbf16>
    "tpu.trace_start"() <{level = 10 : i32, message = "bqh,bkh->bqk"}> : () -> ()
    %cst_8 = arith.constant dense<0.000000e+00> : vector<2x1x8xf32>
    %13 = tpu.matmul %12, %9, %cst_8 {dimension_numbers = #tpu.dot_dimension_numbers<[2], [2], [1], [1], [0, 0, 0, 1, 1, 1], [0], [0]>} : vector<2x1x32xbf16>, vector<2x8x32xbf16>, vector<2x1x8xf32> -> vector<2x1x8xf32>
    "tpu.trace_stop"() : () -> ()
    %cst_9 = arith.constant dense<0xFF800000> : vector<2x1xf32>
    %14 = vector.multi_reduction <maximumf>, %13, %cst_9 [2] : vector<2x1x8xf32> to vector<2x1xf32>
    %15 = vector.shape_cast %14 : vector<2x1xf32> to vector<2x1x1xf32>
    %16 = vector.broadcast %15 : vector<2x1x1xf32> to vector<2x1x8xf32>
    %17 = arith.subf %13, %16 : vector<2x1x8xf32>
    %18 = math.exp %17 : vector<2x1x8xf32>
    %cst_10 = arith.constant dense<0.000000e+00> : vector<2x1xf32>
    %19 = vector.multi_reduction <add>, %18, %cst_10 [2] : vector<2x1x8xf32> to vector<2x1xf32>
    %20 = vector.shape_cast %19 : vector<2x1xf32> to vector<2x1x1xf32>
    %21 = tpu.reciprocal %20 {approx = true} : vector<2x1x1xf32> -> vector<2x1x1xf32>
    %22 = vector.broadcast %21 : vector<2x1x1xf32> to vector<2x1x8xf32>
    %23 = arith.mulf %18, %22 : vector<2x1x8xf32>
    %24 = arith.truncf %23 : vector<2x1x8xf32> to vector<2x1x8xbf16>
    "tpu.trace_start"() <{level = 10 : i32, message = "bqk,bkh->bqh"}> : () -> ()
    %cst_11 = arith.constant dense<0.000000e+00> : vector<2x1x32xf32>
    %25 = tpu.matmul %24, %10, %cst_11 {dimension_numbers = #tpu.dot_dimension_numbers<[2], [1], [1], [2], [0, 0, 0, 1, 1, 2], [0], [0]>} : vector<2x1x8xbf16>, vector<2x8x32xbf16>, vector<2x1x32xf32> -> vector<2x1x32xf32>
    "tpu.trace_stop"() : () -> ()
    %26 = vector.shape_cast %25 : vector<2x1x32xf32> to vector<2x32xf32>
    %c0_12 = arith.constant 0 : index
    %c0_13 = arith.constant 0 : index
    %27 = vector.load %arg5[%c0_12, %c0_13] : memref<2x32xf32, #tpu.memory_space<vmem>>, vector<2x32xf32>
    tpu.vector_store %arg5[%c0_12, %c0_13], %26 {strides = array<i32>} : memref<2x32xf32, #tpu.memory_space<vmem>>, vector<2x32xf32>,
    return
  }
  func.func @transform_0(%arg0: i32) -> (i32, i32) {
    %c0_i32 = arith.constant 0 : i32
    %c0_i32_0 = arith.constant 0 : i32
    return %arg0, %c0_i32 : i32, i32
  }
  func.func @transform_1(%arg0: i32) -> (i32, i32, i32) {
    %c0_i32 = arith.constant 0 : i32
    %c0_i32_0 = arith.constant 0 : i32
    %c0_i32_1 = arith.constant 0 : i32
    return %arg0, %c0_i32, %c0_i32_0 : i32, i32, i32
  }
  func.func @transform_2(%arg0: i32) -> (i32, i32) {
    %c0_i32 = arith.constant 0 : i32
    %c0_i32_0 = arith.constant 0 : i32
    %c0_i32_1 = arith.constant 0 : i32
    return %c0_i32, %c0_i32_0 : i32, i32
  }
  func.func @transform_3(%arg0: i32) -> (i32, i32) {
    %c0_i32 = arith.constant 0 : i32
    %c0_i32_0 = arith.constant 0 : i32
    %c0_i32_1 = arith.constant 0 : i32
    return %c0_i32, %c0_i32_0 : i32, i32
  }
  func.func @transform_4(%arg0: i32) -> (i32, i32) {
    %c0_i32 = arith.constant 0 : i32
    %c0_i32_0 = arith.constant 0 : i32
    return %arg0, %c0_i32 : i32, i32
  }
}

</mosaic_0001>

<llo_original>
// kernel: tpu_custom_call.1
$region0: #{tpu_custom_call.1}
  #allocation0 [shape = 'u32[]', space=smem, size = 0x4, offset = 0x4, fixed_abs, tag = 'smem constant byte address 0x4 - core index']
  #allocation1 [shape = 'u32[144,128]{1,0:T(1,128)}', space=vmem, size = 0x12000, scoped, tag = 'internal scratch']
  %s0 = inlined_call_operand.hbm [shape: bf16[2,32], index: 0, kind: input, shape index: {}]
  %s1 = inlined_call_operand.hbm [shape: bf16[2,8,32], index: 1, kind: input, shape index: {}]
  %s2 = inlined_call_operand.hbm [shape: bf16[32,64], index: 2, kind: input, shape index: {}]
  %s3 = inlined_call_operand.vmem [shape: f32[1,64], index: 3, kind: input, shape index: {}]
  %s4 = inlined_call_operand.hbm [shape: f32[2,32], index: 4, kind: output, shape index: {}]
  %s5 = sld [smem:[#allocation0]]
  $region38: #{tpu_custom_call.1} parent=0
    _
  %s7 = ssub.s32 1, %s5
  %s8 = scalar_select 0, %s7, %s5
  $region1: #{tpu_custom_call.1} parent=0
    #allocation2 [shape = 'u8[512]{0}', space=vmem, size = 0x400, scoped, tag = 'input window, operand 0, single buffered']
    #allocation3 [shape = 's32[1]{0}', space=sflag, size = 0x4, scoped, tag = 'scoped memory for tpu_custom_call.1']
    #allocation4 [shape = 's32[1]{0}', space=sflag, size = 0x4, scoped, tag = 'scoped memory for tpu_custom_call.1']
    #allocation5 [shape = 'u8[4096]{0}', space=vmem, size = 0x1000, scoped, tag = 'input window, operand 1, single buffered']
    #allocation6 [shape = 's32[1]{0}', space=sflag, size = 0x4, scoped, tag = 'scoped memory for tpu_custom_call.1']
    #allocation7 [shape = 'u8[8192]{0}', space=vmem, size = 0x2000, scoped, tag = 'input window, operand 2, single buffered']
    #allocation8 [shape = 'u8[1024]{0}', space=vmem, size = 0x400, scoped, tag = 'output window, operand 0, single buffered']
    %9 = vsyncpa [#allocation3], 0
    %10 = vsyncpa [#allocation6], 0
    %11 = vsyncpa [#allocation4], 0
    // Predicated region
    $region2: #{tpu_custom_call.1} parent=1 // pred_check
      _
    $region3: #{tpu_custom_call.1} parent=1 // pred_check_branch
      %13 = sbr.rel (0) target = $region5
    $region4: #{tpu_custom_call.1} parent=1 // pred_region
      %s15 = ssub.s32 16, 16
      %16 = vsyncadd [#allocation3], %s15
      %s18 = sshll.u32 [#allocation2], 4
      %s19 = int_to_ptr.vmem [resolvable:$true] %s18
      %21 = dma.hbm_to_vmem [thread:$0]  %s0, 16, %s19, [#allocation3]
    $region5: #{tpu_custom_call.1} parent=1 // pred_fallthru
      _
    // Predicated region
    $region6: #{tpu_custom_call.1} parent=1 // pred_check
      _
    $region7: #{tpu_custom_call.1} parent=1 // pred_check_branch
      %23 = sbr.rel (0) target = $region9
    $region8: #{tpu_custom_call.1} parent=1 // pred_region
      %s25 = ssub.s32 128, 128
      %26 = vsyncadd [#allocation6], %s25
      %s27 = sshll.u32 [#allocation5], 4
      %s28 = int_to_ptr.vmem [resolvable:$true] %s27
      %33 = dma.hbm_to_vmem [thread:$0]  %s1, 128, %s28, [#allocation6], 64, 64, 4
    $region9: #{tpu_custom_call.1} parent=1 // pred_fallthru
      _
    // Predicated region
    $region10: #{tpu_custom_call.1} parent=1 // pred_check
      _
    $region11: #{tpu_custom_call.1} parent=1 // pred_check_branch
      %35 = sbr.rel (0) target = $region13
    $region12: #{tpu_custom_call.1} parent=1 // pred_region
      %s37 = ssub.s32 256, 256
      %38 = vsyncadd [#allocation6], %s37
      %s39 = sshll.u32 [#allocation7], 4
      %s40 = int_to_ptr.vmem [resolvable:$true] %s39
      %45 = dma.hbm_to_vmem [thread:$0]  %s2, 256, %s40, [#allocation6], 64, 64, 4
    $region13: #{tpu_custom_call.1} parent=1 // pred_fallthru
      _
    // Predicated region
    $region14: #{tpu_custom_call.1} parent=1 // pred_check
      _
    $region15: #{tpu_custom_call.1} parent=1 // pred_check_branch
      %47 = sbr.rel (0) target = $region17
    $region16: #{tpu_custom_call.1} parent=1 // pred_region
      _
    $region17: #{tpu_custom_call.1} parent=1 // pred_fallthru
      _
    // Predicated region
    $region18: #{tpu_custom_call.1} parent=1 // pred_check
      _
    $region19: #{tpu_custom_call.1} parent=1 // pred_check_branch
      %49 = sbr.rel (0) target = $region21
    $region20: #{tpu_custom_call.1} parent=1 // pred_region
      %50 = dma.done [#allocation3], 16
    $region21: #{tpu_custom_call.1} parent=1 // pred_fallthru
      _
    // Predicated region
    $region22: #{tpu_custom_call.1} parent=1 // pred_check
      _
    $region23: #{tpu_custom_call.1} parent=1 // pred_check_branch
      %52 = sbr.rel (0) target = $region25
    $region24: #{tpu_custom_call.1} parent=1 // pred_region
      %53 = dma.done [#allocation6], 128
    $region25: #{tpu_custom_call.1} parent=1 // pred_fallthru
      _
    // Predicated region
    $region26: #{tpu_custom_call.1} parent=1 // pred_check
      _
    $region27: #{tpu_custom_call.1} parent=1 // pred_check_branch
      %55 = sbr.rel (0) target = $region29
    $region28: #{tpu_custom_call.1} parent=1 // pred_region
      %56 = dma.done [#allocation6], 256
    $region29: #{tpu_custom_call.1} parent=1 // pred_fallthru
      _
    %v58 = vld [vmem:[#allocation5] sm:$0xf]
    %v59 = vld [vmem:[#allocation5 + $0x4] sm:$0xf]
    %v60 = vld [vmem:[#allocation7] sm:$0xf]
    %v61 = vld [vmem:[#allocation7 + $0x4] sm:$0xf]
    %v62 = vld [vmem:[#allocation7 + $0x8] sm:$0xf]
    %v63 = vld [vmem:[#allocation7 + $0xc] sm:$0xf]
    %v64 = vld [vmem:[%s3] sm:$0x1]
    %v66 = vlaneseq
    %v67 = vshrl.u32 %v66, 7
    %v68 = vsub.s32 0, %v67
    %v69 = vrot.slane %v64, %v68
    %v73 = vunpack.c.l.b16 %v58
    %v74 = vunpack.c.l.b16 %v59
    %v75 = vpack.c.b16 %v74, %v73
    %v80 = vunpack.c.l.b16 %v60
    %v81 = vunpack.c.l.b16 %v61
    %v82 = vunpack.c.l.b16 %v62
    %v83 = vunpack.c.l.b16 %v63
    %v84 = vpack.c.b16 %v81, %v80
    %v85 = vpack.c.b16 %v83, %v82
    %vm88 = vcmask 261120
    %v90 = vsel %vm88, %v75, 0
    %92 = vmatprep.subr.bf16.mxu0 0
    %93 = vmatpush1.bf16.msra.mxu0 0
    %94 = vmatprep.subr.bf16.mxu0 0
    %95 = vmatpush1.bf16.msra.mxu0 0
    %96 = vmatprep.subr.bf16.mxu0 0
    %97 = vmatpush1.bf16.msra.mxu0 0
    %98 = vmatprep.subr.bf16.mxu0 0
    %99 = vmatpush1.bf16.msra.mxu0 0
    %100 = vmatprep.subr.bf16.mxu0 0
    %101 = vmatpush1.bf16.msra.mxu0 0
    %102 = vmatprep.subr.bf16.mxu0 0
    %103 = vmatpush1.bf16.msra.mxu0 0
    %104 = vmatprep.subr.bf16.mxu0 0
    %105 = vmatpush1.bf16.msra.mxu0 %v85
    %106 = vmatprep.subr.bf16.mxu0 0
    %107 = vmatpush1.bf16.msra.mxu0 %v84
    %108 = vmatprep.subr.bf16.mxu0 0
    %109 = vmatpush2.bf16.msra.mxu0 0
    %110 = vmatprep.subr.bf16.mxu0 0
    %111 = vmatpush2.bf16.msra.mxu0 0
    %112 = vmatprep.subr.bf16.mxu0 0
    %113 = vmatpush2.bf16.msra.mxu0 0
    %114 = vmatprep.subr.bf16.mxu0 0
    %115 = vmatpush2.bf16.msra.mxu0 0
    %116 = vmatprep.subr.bf16.mxu0 0
    %117 = vmatpush2.bf16.msra.mxu0 0
    %118 = vmatprep.subr.bf16.mxu0 0
    %119 = vmatpush2.bf16.msra.mxu0 0
    %120 = vmatprep.subr.bf16.mxu0 0
    %121 = vmatpush2.bf16.msra.mxu0 0
    %122 = vmatprep.subr.bf16.mxu0 0
    %123 = vmatpush2.bf16.msra.mxu0 0
    %124 = vmatprep.mubr.bf16.mxu0 0
    %125 = vmatmul.mubr.bf16.gmra.mxu0 %v90
    %v126 = vpop.f32.mrf.mxu0
    %v127 = vadd.f32 %v69, %v126
    %v128 = vpop.f32.mrf.mxu0
    %v129 = vpop.f32.mrf.mxu0
    %v130 = vadd.f32 %v69, %v129
    %v131 = vpop.f32.mrf.mxu0
    %132 = vdwg.mxu0
    %v133 = vpack.c.bf16 %v130, %v127
    %v135 = vunpack.c.l.b16 %v133
    %v136 = vunpack.c.h.b16 %v133
    %v137 = vpack.c.b16 %v135, %v135
    %v138 = vpack.c.b16 %v136, %v136
    %v139 = vld [vmem:[#allocation2] sm:$0x1]
    %v141 = vunpack.i.l.s16 %v139
    %v142 = vunpack.i.h.s16 %v139
    %v143 = vpack.i.b16 %v141, %v141
    %v144 = vlaneseq
    %v145 = vshrl.u32 %v144, 7
    %v146 = vsub.s32 0, %v145
    %v147 = vrot.slane %v143, %v146
    %v149 = vsel %vm88, %v147, 0
    %v152 = vsel %vm88, %v137, 0
    %154 = vmatprep.subr.bf16.mxu0 0
    %155 = vmatpush1.bf16.xpose.msra.mxu0 0
    %156 = vmatprep.subr.bf16.mxu0 0
    %157 = vmatpush1.bf16.xpose.msra.mxu0 0
    %158 = vmatprep.subr.bf16.mxu0 0
    %159 = vmatpush1.bf16.xpose.msra.mxu0 0
    %160 = vmatprep.subr.bf16.mxu0 0
    %161 = vmatpush1.bf16.xpose.msra.mxu0 0
    %162 = vmatprep.subr.bf16.mxu0 0
    %163 = vmatpush1.bf16.xpose.msra.mxu0 0
    %164 = vmatprep.subr.bf16.mxu0 0
    %165 = vmatpush1.bf16.xpose.msra.mxu0 0
    %166 = vmatprep.subr.bf16.mxu0 0
    %167 = vmatpush1.bf16.xpose.msra.mxu0 0
    %168 = vmatprep.subr.bf16.mxu0 0
    %169 = vmatpush1.bf16.xpose.msra.mxu0 %v152
    %170 = vmatprep.subr.bf16.mxu0 0
    %171 = vmatpush2.bf16.xpose.msra.mxu0 0
    %172 = vmatprep.subr.bf16.mxu0 0
    %173 = vmatpush2.bf16.xpose.msra.mxu0 0
    %174 = vmatprep.subr.bf16.mxu0 0
    %175 = vmatpush2.bf16.xpose.msra.mxu0 0
    %176 = vmatprep.subr.bf16.mxu0 0
    %177 = vmatpush2.bf16.xpose.msra.mxu0 0
    %178 = vmatprep.subr.bf16.mxu0 0
    %179 = vmatpush2.bf16.xpose.msra.mxu0 0
    %180 = vmatprep.subr.bf16.mxu0 0
    %181 = vmatpush2.bf16.xpose.msra.mxu0 0
    %182 = vmatprep.subr.bf16.mxu0 0
    %183 = vmatpush2.bf16.xpose.msra.mxu0 0
    %184 = vmatprep.subr.bf16.mxu0 0
    %185 = vmatpush2.bf16.xpose.msra.mxu0 0
    %186 = vmatprep.mubr.bf16.mxu0 0
    %187 = vmatmul.mubr.bf16.gmra.mxu0 %v149
    %v188 = vpop.f32.mrf.mxu0
    %v189 = vadd.f32 0.0, %v188
    %v190 = vpop.f32.mrf.mxu0
    %v191 = vpop.f32.mrf.mxu0
    %v192 = vpop.f32.mrf.mxu0
    %193 = vdwg.mxu0
    %v194 = vpack.i.b16 %v142, %v142
    %v195 = vlaneseq
    %v196 = vshrl.u32 %v195, 7
    %v197 = vsub.s32 0, %v196
    %v198 = vrot.slane %v194, %v197
    %v200 = vsel %vm88, %v198, 0
    %v203 = vsel %vm88, %v138, 0
    %205 = vmatprep.subr.bf16.mxu0 0
    %206 = vmatpush1.bf16.xpose.msra.mxu0 0
    %207 = vmatprep.subr.bf16.mxu0 0
    %208 = vmatpush1.bf16.xpose.msra.mxu0 0
    %209 = vmatprep.subr.bf16.mxu0 0
    %210 = vmatpush1.bf16.xpose.msra.mxu0 0
    %211 = vmatprep.subr.bf16.mxu0 0
    %212 = vmatpush1.bf16.xpose.msra.mxu0 0
    %213 = vmatprep.subr.bf16.mxu0 0
    %214 = vmatpush1.bf16.xpose.msra.mxu0 0
    %215 = vmatprep.subr.bf16.mxu0 0
    %216 = vmatpush1.bf16.xpose.msra.mxu0 0
    %217 = vmatprep.subr.bf16.mxu0 0
    %218 = vmatpush1.bf16.xpose.msra.mxu0 0
    %219 = vmatprep.subr.bf16.mxu0 0
    %220 = vmatpush1.bf16.xpose.msra.mxu0 %v203
    %221 = vmatprep.subr.bf16.mxu0 0
    %222 = vmatpush2.bf16.xpose.msra.mxu0 0
    %223 = vmatprep.subr.bf16.mxu0 0
    %224 = vmatpush2.bf16.xpose.msra.mxu0 0
    %225 = vmatprep.subr.bf16.mxu0 0
    %226 = vmatpush2.bf16.xpose.msra.mxu0 0
    %227 = vmatprep.subr.bf16.mxu0 0
    %228 = vmatpush2.bf16.xpose.msra.mxu0 0
    %229 = vmatprep.subr.bf16.mxu0 0
    %230 = vmatpush2.bf16.xpose.msra.mxu0 0
    %231 = vmatprep.subr.bf16.mxu0 0
    %232 = vmatpush2.bf16.xpose.msra.mxu0 0
    %233 = vmatprep.subr.bf16.mxu0 0
    %234 = vmatpush2.bf16.xpose.msra.mxu0 0
    %235 = vmatprep.subr.bf16.mxu0 0
    %236 = vmatpush2.bf16.xpose.msra.mxu0 0
    %237 = vmatprep.mubr.bf16.mxu0 0
    %238 = vmatmul.mubr.bf16.gmra.mxu0 %v200
    %v239 = vpop.f32.mrf.mxu0
    %v240 = vadd.f32 0.0, %v239
    %v241 = vpop.f32.mrf.mxu0
    %v242 = vpop.f32.mrf.mxu0
    %v243 = vpop.f32.mrf.mxu0
    %244 = vdwg.mxu0
    %vm245 = vcmask 57344
    %v246 = vsel %vm245, %v189, -inf
    %247 = vmax.xlane.f32.xlu0 %v246
    %v248 = vpop.xlane.xlu0 %247
    %v249 = vsel %vm245, %v240, -inf
    %250 = vmax.xlane.f32.xlu0 %v249
    %v251 = vpop.xlane.xlu0 %250
    %v252 = vsub.f32 %v189, %v248
    %v253 = vsub.f32 %v240, %v251
    %v254 = vmul.f32 %v252, 1.442695
    %v255 = vpow.pop %v254
    %v256 = vmul.f32 %v253, 1.442695
    %v257 = vpow.pop %v256
    %v258 = vsel %vm245, %v255, 0.0
    %259 = vadd.xlane.f32.xlu0 %v258
    %v260 = vpop.xlane.xlu0 %259
    %v261 = vsel %vm245, %v257, 0.0
    %262 = vadd.xlane.f32.xlu0 %v261
    %v263 = vpop.xlane.xlu0 %262
    %v264 = vrcp.pop %v260
    %v265 = vrcp.pop %v263
    %v266 = vmul.f32 %v255, %v264
    %v267 = vmul.f32 %v257, %v265
    %v268 = vpack.c.bf16 %v266, %v266
    %v269 = vpack.c.bf16 %v267, %v267
    %270 = vrot.lane.b32.xlu0 %v137, 96
    %v271 = vpop.permute.xlu0 %270
    %vm272 = vcmask 64512
    %v274 = vsel %vm272, %v268, 0
    %vm276 = vcmask 1043456
    %v278 = vsel %vm276, %v271, 0
    %280 = vmatprep.subr.bf16.mxu0 0
    %281 = vmatpush1.bf16.msra.mxu0 0
    %282 = vmatprep.subr.bf16.mxu0 0
    %283 = vmatpush1.bf16.msra.mxu0 0
    %284 = vmatprep.subr.bf16.mxu0 0
    %285 = vmatpush1.bf16.msra.mxu0 0
    %286 = vmatprep.subr.bf16.mxu0 0
    %287 = vmatpush1.bf16.msra.mxu0 0
    %288 = vmatprep.subr.bf16.mxu0 0
    %289 = vmatpush1.bf16.msra.mxu0 0
    %290 = vmatprep.subr.bf16.mxu0 0
    %291 = vmatpush1.bf16.msra.mxu0 0
    %292 = vmatprep.subr.bf16.mxu0 0
    %293 = vmatpush1.bf16.msra.mxu0 0
    %294 = vmatprep.subr.bf16.mxu0 0
    %295 = vmatpush1.bf16.msra.mxu0 %v278
    %296 = vmatprep.subr.bf16.mxu0 0
    %297 = vmatpush2.bf16.msra.mxu0 0
    %298 = vmatprep.subr.bf16.mxu0 0
    %299 = vmatpush2.bf16.msra.mxu0 0
    %300 = vmatprep.subr.bf16.mxu0 0
    %301 = vmatpush2.bf16.msra.mxu0 0
    %302 = vmatprep.subr.bf16.mxu0 0
    %303 = vmatpush2.bf16.msra.mxu0 0
    %304 = vmatprep.subr.bf16.mxu0 0
    %305 = vmatpush2.bf16.msra.mxu0 0
    %306 = vmatprep.subr.bf16.mxu0 0
    %307 = vmatpush2.bf16.msra.mxu0 0
    %308 = vmatprep.subr.bf16.mxu0 0
    %309 = vmatpush2.bf16.msra.mxu0 0
    %310 = vmatprep.subr.bf16.mxu0 0
    %311 = vmatpush2.bf16.msra.mxu0 0
    %312 = vmatprep.mubr.bf16.mxu0 0
    %313 = vmatmul.mubr.bf16.gmra.mxu0 %v274
    %v314 = vpop.f32.mrf.mxu0
    %v315 = vadd.f32 0.0, %v314
    %v316 = vpop.f32.mrf.mxu0
    %v317 = vpop.f32.mrf.mxu0
    %v318 = vpop.f32.mrf.mxu0
    %319 = vdwg.mxu0
    %320 = vrot.lane.b32.xlu0 %v138, 96
    %v321 = vpop.permute.xlu0 %320
    %v323 = vsel %vm272, %v269, 0
    %v326 = vsel %vm276, %v321, 0
    %328 = vmatprep.subr.bf16.mxu0 0
    %329 = vmatpush1.bf16.msra.mxu0 0
    %330 = vmatprep.subr.bf16.mxu0 0
    %331 = vmatpush1.bf16.msra.mxu0 0
    %332 = vmatprep.subr.bf16.mxu0 0
    %333 = vmatpush1.bf16.msra.mxu0 0
    %334 = vmatprep.subr.bf16.mxu0 0
    %335 = vmatpush1.bf16.msra.mxu0 0
    %336 = vmatprep.subr.bf16.mxu0 0
    %337 = vmatpush1.bf16.msra.mxu0 0
    %338 = vmatprep.subr.bf16.mxu0 0
    %339 = vmatpush1.bf16.msra.mxu0 0
    %340 = vmatprep.subr.bf16.mxu0 0
    %341 = vmatpush1.bf16.msra.mxu0 0
    %342 = vmatprep.subr.bf16.mxu0 0
    %343 = vmatpush1.bf16.msra.mxu0 %v326
    %344 = vmatprep.subr.bf16.mxu0 0
    %345 = vmatpush2.bf16.msra.mxu0 0
    %346 = vmatprep.subr.bf16.mxu0 0
    %347 = vmatpush2.bf16.msra.mxu0 0
    %348 = vmatprep.subr.bf16.mxu0 0
    %349 = vmatpush2.bf16.msra.mxu0 0
    %350 = vmatprep.subr.bf16.mxu0 0
    %351 = vmatpush2.bf16.msra.mxu0 0
    %352 = vmatprep.subr.bf16.mxu0 0
    %353 = vmatpush2.bf16.msra.mxu0 0
    %354 = vmatprep.subr.bf16.mxu0 0
    %355 = vmatpush2.bf16.msra.mxu0 0
    %356 = vmatprep.subr.bf16.mxu0 0
    %357 = vmatpush2.bf16.msra.mxu0 0
    %358 = vmatprep.subr.bf16.mxu0 0
    %359 = vmatpush2.bf16.msra.mxu0 0
    %360 = vmatprep.mubr.bf16.mxu0 0
    %361 = vmatmul.mubr.bf16.gmra.mxu0 %v323
    %v362 = vpop.f32.mrf.mxu0
    %v363 = vadd.f32 0.0, %v362
    %v364 = vpop.f32.mrf.mxu0
    %v365 = vpop.f32.mrf.mxu0
    %v366 = vpop.f32.mrf.mxu0
    %367 = vdwg.mxu0
    %v370 = vrot.slane %v363, 7
    %vm371 = vcmask 1041409
    %v372 = vsel %vm371, %v370, %v315
    %vm374 = vcmask 254976
    %375 = vst.msk [vmem:[#allocation8] sm:$0x3] %vm374, %v372
    // Predicated region
    $region30: #{tpu_custom_call.1} parent=1 // pred_check
      _
    $region31: #{tpu_custom_call.1} parent=1 // pred_check_branch
      %377 = sbr.rel (0) target = $region33
    $region32: #{tpu_custom_call.1} parent=1 // pred_region
      %s379 = ssub.s32 32, 32
      %380 = vsyncadd [#allocation4], %s379
      %s382 = sshll.u32 [#allocation8], 4
      %s383 = int_to_ptr.vmem [resolvable:$true] %s382
      %385 = dma.vmem_to_hbm [thread:$0]  %s383, 32, %s4, [#allocation4]
    $region33: #{tpu_custom_call.1} parent=1 // pred_fallthru
      _
    // Predicated region
    $region34: #{tpu_custom_call.1} parent=1 // pred_check
      _
    $region35: #{tpu_custom_call.1} parent=1 // pred_check_branch
      %387 = sbr.rel (0) target = $region37
    $region36: #{tpu_custom_call.1} parent=1 // pred_region
      %388 = dma.done [#allocation4], 32
    $region37: #{tpu_custom_call.1} parent=1 // pred_fallthru
      _
    %389 = vsyncpa [#allocation3], 1
    %390 = vsyncpa [#allocation6], 1
    %391 = vsyncpa [#allocation4], 1

</llo_original>
